<compile_context>
chip_gen: v7x
topology: tpu7x:2x2x1
jax: 0.10.0
libtpu: 0.0.40
codegen_flags: <defaults>
</compile_context>

<pallas_src>
import jax
import jax.numpy as jnp
from jax import lax
from jax.experimental import pallas as pl
from jax.experimental.pallas import tpu as pltpu

LN_EPS = 1e-5
LANE = 128


def _round_up(x, m):
    return (x + m - 1) // m * m


def _cdiv(a, b):
    return (a + b - 1) // b


def _token_extractor_kernel(x_ref, w_ref, b_ref, gamma_ref, beta_ref, o_ref,
                            acc_ref):
    # Grid = (row_tiles, k_tiles); K (reduction) is the last, "arbitrary" axis.
    # x_ref: (tile_m, tk)   w_ref: (tk, d_out)   [native dtype, f32 accumulate]
    # b/gamma/beta: (1, d_out)   o_ref: (tile_m, d_out)   acc_ref: f32 scratch
    k = pl.program_id(1)

    @pl.when(k == 0)
    def _():
        acc_ref[...] = jnp.zeros_like(acc_ref)

    acc_ref[...] += jnp.dot(x_ref[...], w_ref[...],
                            preferred_element_type=jnp.float32)

    @pl.when(k == pl.num_programs(1) - 1)
    def _():
        y = acc_ref[...] + b_ref[...].astype(jnp.float32)
        d_out = o_ref.shape[-1]
        inv_n = 1.0 / d_out  # biased variance, as in PyTorch LayerNorm
        # Single-pass stats: both lane reductions can overlap on the XLU.
        mean = jnp.sum(y, axis=-1, keepdims=True) * inv_n
        mean_sq = jnp.sum(y * y, axis=-1, keepdims=True) * inv_n
        var = jnp.maximum(mean_sq - mean * mean, 0.0)
        y_norm = (y - mean) * lax.rsqrt(var + LN_EPS)  # rsqrt -> EUP slot
        out = (y_norm * gamma_ref[...].astype(jnp.float32)
               + beta_ref[...].astype(jnp.float32))
        o_ref[...] = out.astype(o_ref.dtype)


def token_extractor(x, w, b, gamma, beta, *, tile_m=512, tk=None):
    """x: (B, S, D_in); w: (D_in, D_out); b/gamma/beta: (D_out,)."""
    B, S, d_in = x.shape
    d_in_w, d_out = w.shape
    assert d_in == d_in_w
    rows = B * S

    x_item = x.dtype.itemsize
    w_item = w.dtype.itemsize
    o_item = x.dtype.itemsize

    # Sub-32-bit dtypes pack rows along sublanes: keep row tiles pack-aligned.
    row_align = {4: 8, 2: 16, 1: 32}.get(x_item, 8)

    # --- K (reduction) tiling --------------------------------------------
    if tk is None:
        tk = d_in
        # Tile K only when the weight would otherwise eat too much VMEM and
        # d_in is lane-aligned (so x never needs a padding copy).
        if d_in % LANE == 0 and d_in > 512 and d_in * d_out * w_item > (8 << 20):
            for cand in (512, 256, 1024, 128):  # prefer 256/512 (MXU K fill)
                if d_in % cand == 0:
                    tk = cand
                    break
    assert tk == d_in or (d_in % tk == 0 and tk % LANE == 0)
    nk = d_in // tk

    # --- Row tiling --------------------------------------------------------
    tile_m = max(row_align, min(int(tile_m), _round_up(rows, row_align)))
    tile_m = _round_up(tile_m, row_align)

    # Generation-aware VMEM budget (v5e/v6e: 128 MiB, v7x: 64 MiB).
    try:
        vmem_cap = int(pltpu.get_tpu_info().vmem_capacity_bytes)
    except Exception:
        vmem_cap = 64 << 20
    budget = int(0.85 * vmem_cap)

    def vmem_need(tm):
        return (2 * tm * tk * x_item                          # x, double-buffered
                + (2 if nk > 1 else 1) * tk * d_out * w_item  # weight tile(s)
                + 2 * tm * d_out * o_item                     # out, double-buffered
                + 3 * d_out * 4                               # b / gamma / beta
                + tm * d_out * 4                              # f32 accumulator
                + 2 * tm * d_out * 4)                         # f32 LN temporaries

    while vmem_need(tile_m) > budget and tile_m > row_align:
        tile_m = max(row_align, _round_up(tile_m // 2, row_align))

    # v7x has 2 TensorCores; give the "parallel" row axis >= 2 steps when the
    # row count allows it (harmless on single-TC v5e/v6e).
    if _cdiv(rows, tile_m) == 1 and rows > row_align:
        tile_m = _round_up(_cdiv(rows, 2), row_align)

    n_row = _cdiv(rows, tile_m)

    vmem_limit = int(min(max(int(1.5 * vmem_need(tile_m)) + (2 << 20),
                             16 << 20),
                         budget))

    x2 = x.reshape(rows, d_in)
    b2 = b.reshape(1, d_out)
    g2 = gamma.reshape(1, d_out)
    be2 = beta.reshape(1, d_out)

    invariant = pl.Buffered(1)  # never re-fetched -> single VMEM buffer
    if nk == 1:
        w_spec = pl.BlockSpec((tk, d_out), lambda i, k: (k, 0),
                              pipeline_mode=invariant)
    else:
        w_spec = pl.BlockSpec((tk, d_out), lambda i, k: (k, 0))

    out2 = pl.pallas_call(
        _token_extractor_kernel,
        out_shape=jax.ShapeDtypeStruct((rows, d_out), x.dtype),
        grid_spec=pltpu.PrefetchScalarGridSpec(
            num_scalar_prefetch=0,
            grid=(n_row, nk),
            in_specs=[
                pl.BlockSpec((tile_m, tk), lambda i, k: (i, k)),
                w_spec,
                pl.BlockSpec((1, d_out), lambda i, k: (0, 0),
                             pipeline_mode=invariant),
                pl.BlockSpec((1, d_out), lambda i, k: (0, 0),
                             pipeline_mode=invariant),
                pl.BlockSpec((1, d_out), lambda i, k: (0, 0),
                             pipeline_mode=invariant),
            ],
            out_specs=pl.BlockSpec((tile_m, d_out), lambda i, k: (i, 0)),
            scratch_shapes=[pltpu.VMEM((tile_m, d_out), jnp.float32)],
        ),
        compiler_params=pltpu.CompilerParams(
            dimension_semantics=("parallel", "arbitrary"),
            vmem_limit_bytes=vmem_limit,
        ),
        cost_estimate=pl.CostEstimate(
            flops=2 * rows * d_in * d_out,
            transcendentals=rows,
            bytes_accessed=(rows * d_in * x_item + rows * d_out * o_item
                            + d_in * d_out * w_item + 3 * d_out * 4),
        ),
    )(x2, w, b2, g2, be2)

    return out2.reshape(B, S, d_out)


def reference(x, w, b, gamma, beta):
    y = jnp.einsum("bsd,de->bse", x, w) + b
    mean = jnp.mean(y, axis=-1, keepdims=True)
    var = jnp.mean((y - mean) ** 2, axis=-1, keepdims=True)
    return (y - mean) / jnp.sqrt(var + LN_EPS) * gamma + beta


if __name__ == "__main__":
    # Small shapes: batch=2, seq=8, input_dim=32, output_dim=32
    B, S, D_in, D_out = 2, 8, 32, 32

    key = jax.random.PRNGKey(0)
    kx, kw, kb = jax.random.split(key, 3)

    x = jax.random.normal(kx, (B, S, D_in), dtype=jnp.float32)

    bound = 1.0 / (D_in ** 0.5)
    w = jax.random.uniform(kw, (D_in, D_out), minval=-bound, maxval=bound,
                           dtype=jnp.float32)
    b = jax.random.uniform(kb, (D_out,), minval=-bound, maxval=bound,
                           dtype=jnp.float32)
    # Non-trivial affine params to exercise gamma/beta paths.
    gamma = 1.0 + 0.05 * jnp.arange(D_out, dtype=jnp.float32)
    beta = 0.01 * jnp.arange(D_out, dtype=jnp.float32)

    # 1) f32, default tile (row grid split so both v7x TCs get work).
    out = jax.block_until_ready(token_extractor(x, w, b, gamma, beta))
    ref = reference(x, w, b, gamma, beta)
    assert out.shape == (B, S, D_out)
    assert jnp.allclose(out, ref, atol=1e-5, rtol=1e-5), "f32 mismatch"

    # 2) Ragged rows (B*S=21, not a multiple of the tile) -> partial last
    #    row block handled by the pipeline (no wrapper-side padding copy).
    x_odd = jax.random.normal(jax.random.PRNGKey(1), (3, 7, D_in),
                              dtype=jnp.float32)
    out2 = jax.block_until_ready(
        token_extractor(x_odd, w, b, gamma, beta, tile_m=8))
    ref2 = reference(x_odd, w, b, gamma, beta)
    assert out2.shape == (3, 7, D_out)
    assert jnp.allclose(out2, ref2, atol=1e-5, rtol=1e-5), "ragged mismatch"

    # 3) bf16 native-dtype MXU path with f32 accumulation.
    xbf, wbf = x.astype(jnp.bfloat16), w.astype(jnp.bfloat16)
    bbf = b.astype(jnp.bfloat16)
    gbf, bebf = gamma.astype(jnp.bfloat16), beta.astype(jnp.bfloat16)
    out3 = jax.block_until_ready(token_extractor(xbf, wbf, bbf, gbf, bebf))
    ref3 = reference(xbf.astype(jnp.float32), wbf.astype(jnp.float32),
                     bbf.astype(jnp.float32), gbf.astype(jnp.float32),
                     bebf.astype(jnp.float32))
    assert out3.dtype == jnp.bfloat16
    assert jnp.allclose(out3.astype(jnp.float32), ref3,
                        atol=1e-1, rtol=5e-2), "bf16 mismatch"

    # 4) K-tiled accumulator path (forced tk) + multi-row grid.
    B4, S4, Din4, Dout4 = 4, 16, 256, 128
    k4 = jax.random.PRNGKey(2)
    k4x, k4w, k4b = jax.random.split(k4, 3)
    x4 = jax.random.normal(k4x, (B4, S4, Din4), dtype=jnp.float32)
    bnd4 = 1.0 / (Din4 ** 0.5)
    w4 = jax.random.uniform(k4w, (Din4, Dout4), minval=-bnd4, maxval=bnd4,
                            dtype=jnp.float32)
    b4 = jax.random.uniform(k4b, (Dout4,), minval=-bnd4, maxval=bnd4,
                            dtype=jnp.float32)
    g4 = 1.0 + 0.02 * jnp.arange(Dout4, dtype=jnp.float32)
    be4 = 0.005 * jnp.arange(Dout4, dtype=jnp.float32)
    out4 = jax.block_until_ready(
        token_extractor(x4, w4, b4, g4, be4, tile_m=32, tk=128))
    ref4 = reference(x4, w4, b4, g4, be4)
    assert out4.shape == (B4, S4, Dout4)
    assert jnp.allclose(out4, ref4, atol=1e-4, rtol=1e-4), "K-tiled mismatch"

    print("KERNEL_OK")
</pallas_src>

<mosaic_0001>
module attributes {stable_mosaic.version = 11 : i64} {
  func.func @_token_extractor_kernel(%arg0: i32, %arg1: i32, %arg2: memref<8x32xf32, #tpu.memory_space<vmem>>, %arg3: memref<32x32xf32, #tpu.memory_space<vmem>>, %arg4: memref<1x32xf32, #tpu.memory_space<vmem>>, %arg5: memref<1x32xf32, #tpu.memory_space<vmem>>, %arg6: memref<1x32xf32, #tpu.memory_space<vmem>>, %arg7: memref<8x32xf32, #tpu.memory_space<vmem>>, %arg8: memref<8x32xf32, #tpu.memory_space<vmem>>) attributes {dimension_semantics = [#tpu.dimension_semantics<parallel>, #tpu.dimension_semantics<arbitrary>], iteration_bounds = array<i64: 2, 1>, scalar_prefetch = 0 : i64, scratch_operands = 1 : i64, tpu.core_type = #tpu.core_type<tc>, window_params = [{transform_indices = @transform_0, window_bounds = array<i64: 8, 32>}, {pipeline_mode = #tpu.pipeline_mode<synchronous>, transform_indices = @transform_1, window_bounds = array<i64: 32, 32>}, {pipeline_mode = #tpu.pipeline_mode<synchronous>, transform_indices = @transform_2, window_bounds = array<i64: 1, 32>}, {pipeline_mode = #tpu.pipeline_mode<synchronous>, transform_indices = @transform_3, window_bounds = array<i64: 1, 32>}, {pipeline_mode = #tpu.pipeline_mode<synchronous>, transform_indices = @transform_4, window_bounds = array<i64: 1, 32>}, {transform_indices = @transform_5, window_bounds = array<i64: 8, 32>}]} {
    %c0_i32 = arith.constant 0 : i32
    %0 = arith.cmpi eq, %arg1, %c0_i32 : i32
    %1 = arith.extui %0 : i1 to i32
    %c0_i32_0 = arith.constant 0 : i32
    %2 = arith.cmpi ne, %1, %c0_i32_0 : i32
    scf.if %2 {
      %cst_10 = arith.constant 0.000000e+00 : f32
      %12 = vector.broadcast %cst_10 : f32 to vector<8x32xf32>
      %c0_11 = arith.constant 0 : index
      %c0_12 = arith.constant 0 : index
      %13 = vector.load %arg8[%c0_11, %c0_12] : memref<8x32xf32, #tpu.memory_space<vmem>>, vector<8x32xf32>
      tpu.vector_store %arg8[%c0_11, %c0_12], %12 {strides = array<i32>} : memref<8x32xf32, #tpu.memory_space<vmem>>, vector<8x32xf32>,
    } else {
    }
    %c0 = arith.constant 0 : index
    %c0_1 = arith.constant 0 : index
    %3 = vector.load %arg8[%c0, %c0_1] : memref<8x32xf32, #tpu.memory_space<vmem>>, vector<8x32xf32>
    %c0_2 = arith.constant 0 : index
    %c0_3 = arith.constant 0 : index
    %4 = vector.load %arg2[%c0_2, %c0_3] : memref<8x32xf32, #tpu.memory_space<vmem>>, vector<8x32xf32>
    %c0_4 = arith.constant 0 : index
    %c0_5 = arith.constant 0 : index
    %5 = vector.load %arg3[%c0_4, %c0_5] : memref<32x32xf32, #tpu.memory_space<vmem>>, vector<32x32xf32>
    %cst = arith.constant dense<0.000000e+00> : vector<8x32xf32>
    %6 = tpu.matmul %4, %5, %cst {dimension_numbers = #tpu.dot_dimension_numbers<[1], [0], [0], [1], [0, 0, 1, 1], [], []>} : vector<8x32xf32>, vector<32x32xf32>, vector<8x32xf32> -> vector<8x32xf32>
    %7 = arith.addf %3, %6 : vector<8x32xf32>
    %c0_6 = arith.constant 0 : index
    %c0_7 = arith.constant 0 : index
    %8 = vector.load %arg8[%c0_6, %c0_7] : memref<8x32xf32, #tpu.memory_space<vmem>>, vector<8x32xf32>
    tpu.vector_store %arg8[%c0_6, %c0_7], %7 {strides = array<i32>} : memref<8x32xf32, #tpu.memory_space<vmem>>, vector<8x32xf32>,
    %c0_i32_8 = arith.constant 0 : i32
    %9 = arith.cmpi eq, %arg1, %c0_i32_8 : i32
    %10 = arith.extui %9 : i1 to i32
    %c0_i32_9 = arith.constant 0 : i32
    %11 = arith.cmpi ne, %10, %c0_i32_9 : i32
    scf.if %11 {
      %c0_10 = arith.constant 0 : index
      %c0_11 = arith.constant 0 : index
      %12 = vector.load %arg8[%c0_10, %c0_11] : memref<8x32xf32, #tpu.memory_space<vmem>>, vector<8x32xf32>
      %c0_12 = arith.constant 0 : index
      %c0_13 = arith.constant 0 : index
      %13 = vector.load %arg4[%c0_12, %c0_13] : memref<1x32xf32, #tpu.memory_space<vmem>>, vector<1x32xf32>
      %14 = vector.broadcast %13 : vector<1x32xf32> to vector<8x32xf32>
      %15 = arith.addf %12, %14 : vector<8x32xf32>
      %cst_14 = arith.constant dense<0.000000e+00> : vector<8xf32>
      %16 = vector.multi_reduction <add>, %15, %cst_14 [1] : vector<8x32xf32> to vector<8xf32>
      %17 = vector.shape_cast %16 : vector<8xf32> to vector<8x1xf32>
      %cst_15 = arith.constant 3.125000e-02 : f32
      %18 = vector.broadcast %cst_15 : f32 to vector<8x1xf32>
      %19 = arith.mulf %17, %18 : vector<8x1xf32>
      %20 = arith.mulf %15, %15 : vector<8x32xf32>
      %cst_16 = arith.constant dense<0.000000e+00> : vector<8xf32>
      %21 = vector.multi_reduction <add>, %20, %cst_16 [1] : vector<8x32xf32> to vector<8xf32>
      %22 = vector.shape_cast %21 : vector<8xf32> to vector<8x1xf32>
      %cst_17 = arith.constant 3.125000e-02 : f32
      %23 = vector.broadcast %cst_17 : f32 to vector<8x1xf32>
      %24 = arith.mulf %22, %23 : vector<8x1xf32>
      %25 = arith.mulf %19, %19 : vector<8x1xf32>
      %26 = arith.subf %24, %25 : vector<8x1xf32>
      %cst_18 = arith.constant 0.000000e+00 : f32
      %27 = vector.broadcast %cst_18 : f32 to vector<8x1xf32>
      %28 = arith.maximumf %26, %27 : vector<8x1xf32>
      %29 = vector.broadcast %19 : vector<8x1xf32> to vector<8x32xf32>
      %30 = arith.subf %15, %29 : vector<8x32xf32>
      %cst_19 = arith.constant 9.99999974E-6 : f32
      %31 = vector.broadcast %cst_19 : f32 to vector<8x1xf32>
      %32 = arith.addf %28, %31 : vector<8x1xf32>
      %33 = math.rsqrt %32 : vector<8x1xf32>
      %34 = vector.broadcast %33 : vector<8x1xf32> to vector<8x32xf32>
      %35 = arith.mulf %30, %34 : vector<8x32xf32>
      %c0_20 = arith.constant 0 : index
      %c0_21 = arith.constant 0 : index
      %36 = vector.load %arg5[%c0_20, %c0_21] : memref<1x32xf32, #tpu.memory_space<vmem>>, vector<1x32xf32>
      %37 = vector.broadcast %36 : vector<1x32xf32> to vector<8x32xf32>
      %38 = arith.mulf %35, %37 : vector<8x32xf32>
      %c0_22 = arith.constant 0 : index
      %c0_23 = arith.constant 0 : index
      %39 = vector.load %arg6[%c0_22, %c0_23] : memref<1x32xf32, #tpu.memory_space<vmem>>, vector<1x32xf32>
      %40 = vector.broadcast %39 : vector<1x32xf32> to vector<8x32xf32>
      %41 = arith.addf %38, %40 : vector<8x32xf32>
      %c0_24 = arith.constant 0 : index
      %c0_25 = arith.constant 0 : index
      %42 = vector.load %arg7[%c0_24, %c0_25] : memref<8x32xf32, #tpu.memory_space<vmem>>, vector<8x32xf32>
      tpu.vector_store %arg7[%c0_24, %c0_25], %41 {strides = array<i32>} : memref<8x32xf32, #tpu.memory_space<vmem>>, vector<8x32xf32>,
    } else {
    }
    return
  }
  func.func @transform_0(%arg0: i32, %arg1: i32) -> (i32, i32) {
    %c0_i32 = arith.constant 0 : i32
    return %arg0, %arg1 : i32, i32
  }
  func.func @transform_1(%arg0: i32, %arg1: i32) -> (i32, i32) {
    %c0_i32 = arith.constant 0 : i32
    %c0_i32_0 = arith.constant 0 : i32
    return %arg1, %c0_i32 : i32, i32
  }
  func.func @transform_2(%arg0: i32, %arg1: i32) -> (i32, i32) {
    %c0_i32 = arith.constant 0 : i32
    %c0_i32_0 = arith.constant 0 : i32
    %c0_i32_1 = arith.constant 0 : i32
    return %c0_i32, %c0_i32_0 : i32, i32
  }
  func.func @transform_3(%arg0: i32, %arg1: i32) -> (i32, i32) {
    %c0_i32 = arith.constant 0 : i32
    %c0_i32_0 = arith.constant 0 : i32
    %c0_i32_1 = arith.constant 0 : i32
    return %c0_i32, %c0_i32_0 : i32, i32
  }
  func.func @transform_4(%arg0: i32, %arg1: i32) -> (i32, i32) {
    %c0_i32 = arith.constant 0 : i32
    %c0_i32_0 = arith.constant 0 : i32
    %c0_i32_1 = arith.constant 0 : i32
    return %c0_i32, %c0_i32_0 : i32, i32
  }
  func.func @transform_5(%arg0: i32, %arg1: i32) -> (i32, i32) {
    %c0_i32 = arith.constant 0 : i32
    %c0_i32_0 = arith.constant 0 : i32
    return %arg0, %c0_i32 : i32, i32
  }
}

</mosaic_0001>

<llo_original>
// kernel: tpu_custom_call.1
$region0: #{tpu_custom_call.1}
  #allocation0 [shape = 'u32[]', space=smem, size = 0x4, offset = 0x4, fixed_abs, tag = 'smem constant byte address 0x4 - core index']
  #allocation1 [shape = 'u32[144,128]{1,0:T(1,128)}', space=vmem, size = 0x12000, scoped, tag = 'internal scratch']
  #allocation2 [shape = 'f32[8,32]{1,0:T(8,128)}', space=vmem, size = 0x1000, scoped, tag = 'scratch operand']
  %s0 = inlined_call_operand.hbm [shape: f32[16,32], index: 0, kind: input, shape index: {}]
  %s1 = inlined_call_operand.hbm [shape: f32[32,32], index: 1, kind: input, shape index: {}]
  %s2 = inlined_call_operand.vmem [shape: f32[1,32], index: 2, kind: input, shape index: {}]
  %s3 = inlined_call_operand.vmem [shape: f32[1,32], index: 3, kind: input, shape index: {}]
  %s4 = inlined_call_operand.vmem [shape: f32[1,32], index: 4, kind: input, shape index: {}]
  %s5 = inlined_call_operand.hbm [shape: f32[16,32], index: 5, kind: output, shape index: {}]
  %s6 = sld [smem:[#allocation0]]
  $region69: #{tpu_custom_call.1} parent=0
    _
  %s8 = ssub.s32 1, %s6
  %s9 = scalar_select 0, %s8, %s6
  $region1: #{tpu_custom_call.1} parent=0
    #allocation3 [shape = 'u8[8192]{0}', space=vmem, size = 0x2000, scoped, tag = 'input window, operand 0']
    #allocation4 [shape = 's32[2]{0}', space=sflag, size = 0x8, scoped, tag = 'scoped memory for tpu_custom_call.1']
    #allocation5 [shape = 's32[2]{0}', space=sflag, size = 0x8, scoped, tag = 'scoped memory for tpu_custom_call.1']
    #allocation6 [shape = 'u8[16384]{0}', space=vmem, size = 0x4000, scoped, tag = 'input window, operand 1, single buffered']
    #allocation7 [shape = 's32[1]{0}', space=sflag, size = 0x4, scoped, tag = 'scoped memory for tpu_custom_call.1']
    #allocation8 [shape = 'u8[8192]{0}', space=vmem, size = 0x2000, scoped, tag = 'output window, operand 0']
    %10 = vsyncpa [#allocation4], 0
    %s11 = scalar_lea.sflag [#allocation4], 1
    %12 = vsyncpa %s11, 0
    %13 = vsyncpa [#allocation7], 0
    %14 = vsyncpa [#allocation5], 0
    %s15 = scalar_lea.sflag [#allocation5], 1
    %16 = vsyncpa %s15, 0
    loop: start=0, step=1, limit=4
    $region2: #{tpu_custom_call.1} parent=1 // loop_pre_header
      _
    $region3: #{tpu_custom_call.1} parent=1 // loop_header
      %s18 = sphi 0, %s22
      %p19 = scmp.ge.s32.totalorder %s18, 4
      %s25 = sphi 0, %s37
      %s26 = sphi 0, %s33
      %s27 = sphi 0, %s25
      %s28 = sphi 0, %s26
      %s29 = sphi 0, %s27
      %s30 = sphi 0, %s28
      %s42 = sphi 0, %s44
      %s45 = sphi 0, %s42
      %s46 = sphi 0, %s45
      %s62 = sphi 0, %s46
      %s68 = sphi 0, %s70
      %s71 = sphi 0, %s68
      %s72 = sphi 0, %s71
      %s88 = sphi 0, %s72
      %s92 = sphi 0, %s92
      %s94 = sphi 0, %s92
      %s95 = sphi 0, %s94
      %s109 = sphi 0, %s95
      %s113 = sphi 0, %s113
      %s115 = sphi 0, %s113
      %s116 = sphi 0, %s115
      %s130 = sphi 0, %s116
      %s134 = sphi 0, %s134
      %s136 = sphi 0, %s134
      %s137 = sphi 0, %s136
      %s151 = sphi 0, %s137
      %s157 = sphi 0, %s159
      %s160 = sphi 0, %s157
      %s161 = sphi 0, %s160
      %s177 = sphi 0, %s161
    $region4: #{tpu_custom_call.1} parent=1 // loop_header_branch
      %21 = sbr.rel (%p19) target = $region8
    $region5: #{tpu_custom_call.1} parent=1 // loop_body
      %s23 = ssub.s32 %s18, 1
      %s24 = ssub.s32 %s18, 2
      %s31 = sadd.s32 1, %s26
      %p32 = scmp.ge.s32.totalorder %s31, 1
      %s33 = scalar_select %p32, 0, %s31
      %s34 = sadd.s32 1, %s25
      %s35 = scalar_select %p32, %s34, %s25
      %p36 = scmp.ge.s32.totalorder %s35, 2
      %s37 = scalar_select %p36, 0, %s35
      %s38 = ssub.s32 %s25, %s37
      %s39 = ssub.s32 %s26, %s33
      %s40 = sor.u32 %s38, %s39
      %p41 = scmp.eq.s32.totalorder %s40, 0
      %s43 = sadd.s32 %s42, 1
      %s44 = scalar_select %p41, %s42, %s43
      %p47 = pneg %p41
      %p48 = scmp.eq.s32.totalorder %s18, 1
      %p49 = por %p47, %p48
      %p50 = scmp.ne.s32.totalorder %s42, %s45
      %p51 = scmp.eq.s32.totalorder %s18, 0
      %p52 = por %p50, %p51
      %p53 = scmp.ne.s32.totalorder %s42, %s45
      %p54 = scmp.eq.s32.totalorder %s23, 1
      %p55 = por %p53, %p54
      %p56 = scmp.ne.s32.totalorder %s45, %s46
      %p57 = scmp.eq.s32.totalorder %s23, 0
      %p58 = por %p56, %p57
      %p59 = scmp.ne.s32.totalorder %s45, %s46
      %p60 = scmp.eq.s32.totalorder %s24, 1
      %p61 = por %p59, %p60
      %p63 = scmp.ne.s32.totalorder %s46, %s62
      %p64 = scmp.eq.s32.totalorder %s24, 0
      %p65 = por %p63, %p64
      %s66 = ssub.s32 %s26, %s33
      %p67 = scmp.eq.s32.totalorder %s66, 0
      %s69 = sadd.s32 %s68, 1
      %s70 = scalar_select %p67, %s68, %s69
      %p73 = pneg %p67
      %p74 = scmp.eq.s32.totalorder %s18, 1
      %p75 = por %p73, %p74
      %p76 = scmp.ne.s32.totalorder %s68, %s71
      %p77 = scmp.eq.s32.totalorder %s18, 0
      %p78 = por %p76, %p77
      %p79 = scmp.ne.s32.totalorder %s68, %s71
      %p80 = scmp.eq.s32.totalorder %s23, 1
      %p81 = por %p79, %p80
      %p82 = scmp.ne.s32.totalorder %s71, %s72
      %p83 = scmp.eq.s32.totalorder %s23, 0
      %p84 = por %p82, %p83
      %p85 = scmp.ne.s32.totalorder %s71, %s72
      %p86 = scmp.eq.s32.totalorder %s24, 1
      %p87 = por %p85, %p86
      %p89 = scmp.ne.s32.totalorder %s72, %s88
      %p90 = scmp.eq.s32.totalorder %s24, 0
      %p91 = por %p89, %p90
      %s93 = sadd.s32 %s92, 1
      %p96 = scmp.eq.s32.totalorder %s18, 1
      %p97 = scmp.ne.s32.totalorder %s92, %s94
      %p98 = scmp.eq.s32.totalorder %s18, 0
      %p99 = por %p97, %p98
      %p100 = scmp.ne.s32.totalorder %s92, %s94
      %p101 = scmp.eq.s32.totalorder %s23, 1
      %p102 = por %p100, %p101
      %p103 = scmp.ne.s32.totalorder %s94, %s95
      %p104 = scmp.eq.s32.totalorder %s23, 0
      %p105 = por %p103, %p104
      %p106 = scmp.ne.s32.totalorder %s94, %s95
      %p107 = scmp.eq.s32.totalorder %s24, 1
      %p108 = por %p106, %p107
      %p110 = scmp.ne.s32.totalorder %s95, %s109
      %p111 = scmp.eq.s32.totalorder %s24, 0
      %p112 = por %p110, %p111
      %s114 = sadd.s32 %s113, 1
      %p117 = scmp.eq.s32.totalorder %s18, 1
      %p118 = scmp.ne.s32.totalorder %s113, %s115
      %p119 = scmp.eq.s32.totalorder %s18, 0
      %p120 = por %p118, %p119
      %p121 = scmp.ne.s32.totalorder %s113, %s115
      %p122 = scmp.eq.s32.totalorder %s23, 1
      %p123 = por %p121, %p122
      %p124 = scmp.ne.s32.totalorder %s115, %s116
      %p125 = scmp.eq.s32.totalorder %s23, 0
      %p126 = por %p124, %p125
      %p127 = scmp.ne.s32.totalorder %s115, %s116
      %p128 = scmp.eq.s32.totalorder %s24, 1
      %p129 = por %p127, %p128
      %p131 = scmp.ne.s32.totalorder %s116, %s130
      %p132 = scmp.eq.s32.totalorder %s24, 0
      %p133 = por %p131, %p132
      %s135 = sadd.s32 %s134, 1
      %p138 = scmp.eq.s32.totalorder %s18, 1
      %p139 = scmp.ne.s32.totalorder %s134, %s136
      %p140 = scmp.eq.s32.totalorder %s18, 0
      %p141 = por %p139, %p140
      %p142 = scmp.ne.s32.totalorder %s134, %s136
      %p143 = scmp.eq.s32.totalorder %s23, 1
      %p144 = por %p142, %p143
      %p145 = scmp.ne.s32.totalorder %s136, %s137
      %p146 = scmp.eq.s32.totalorder %s23, 0
      %p147 = por %p145, %p146
      %p148 = scmp.ne.s32.totalorder %s136, %s137
      %p149 = scmp.eq.s32.totalorder %s24, 1
      %p150 = por %p148, %p149
      %p152 = scmp.ne.s32.totalorder %s137, %s151
      %p153 = scmp.eq.s32.totalorder %s24, 0
      %p154 = por %p152, %p153
      %s155 = ssub.s32 %s25, %s37
      %p156 = scmp.eq.s32.totalorder %s155, 0
      %s158 = sadd.s32 %s157, 1
      %s159 = scalar_select %p156, %s157, %s158
      %p162 = pneg %p156
      %p163 = scmp.eq.s32.totalorder %s18, 1
      %p164 = por %p162, %p163
      %p165 = scmp.ne.s32.totalorder %s157, %s160
      %p166 = scmp.eq.s32.totalorder %s18, 0
      %p167 = por %p165, %p166
      %p168 = scmp.ne.s32.totalorder %s157, %s160
      %p169 = scmp.eq.s32.totalorder %s23, 1
      %p170 = por %p168, %p169
      %p171 = scmp.ne.s32.totalorder %s160, %s161
      %p172 = scmp.eq.s32.totalorder %s23, 0
      %p173 = por %p171, %p172
      %p174 = scmp.ne.s32.totalorder %s160, %s161
      %p175 = scmp.eq.s32.totalorder %s24, 1
      %p176 = por %p174, %p175
      %p178 = scmp.ne.s32.totalorder %s161, %s177
      %p179 = scmp.eq.s32.totalorder %s24, 0
      %p180 = por %p178, %p179
      %p181 = scmp.le.s32.totalorder 1, %s18
      %p182 = scmp.lt.s32.totalorder %s18, 3
      %p183 = pnand %p181, %p182
      %p184 = pneg %p183
      // Predicated region
      $region9: #{tpu_custom_call.1} parent=5 // pred_check
        _
      $region10: #{tpu_custom_call.1} parent=5 // pred_check_branch
        %186 = sbr.rel (%p183) target = $region12
      $region11: #{tpu_custom_call.1} parent=5 // pred_region
        %s187 = ssub.s32 %s18, 1
        // Predicated region
        $region13: #{tpu_custom_call.1} parent=11 // pred_check
          %p188 = pneg %p84
        $region14: #{tpu_custom_call.1} parent=11 // pred_check_branch
          %190 = sbr.rel (%p188) target = $region16
        $region15: #{tpu_custom_call.1} parent=11 // pred_region
          %s191 = smul.u32 4, %s28
          %s193 = ssub.s32 512, 512
          %194 = vsyncadd [#allocation7], %s193
          %s195 = smul.addr %s191, 128
          %s196 = scalar_lea.hbm %s1, %s195
          %s197 = sshll.u32 [#allocation6], 4
          %s198 = int_to_ptr.vmem [resolvable:$true] %s197
          %203 = dma.hbm_to_vmem [thread:$0]  %s196, 512, %s198, [#allocation7], 128, 128, 8
        $region16: #{tpu_custom_call.1} parent=11 // pred_fallthru
          _
        // Predicated region
        $region17: #{tpu_custom_call.1} parent=11 // pred_check
          %p204 = pneg %p105
        $region18: #{tpu_custom_call.1} parent=11 // pred_check_branch
          %206 = sbr.rel (%p204) target = $region20
        $region19: #{tpu_custom_call.1} parent=11 // pred_region
          _
        $region20: #{tpu_custom_call.1} parent=11 // pred_fallthru
          _
        // Predicated region
        $region21: #{tpu_custom_call.1} parent=11 // pred_check
          %p207 = pneg %p126
        $region22: #{tpu_custom_call.1} parent=11 // pred_check_branch
          %209 = sbr.rel (%p207) target = $region24
        $region23: #{tpu_custom_call.1} parent=11 // pred_region
          _
        $region24: #{tpu_custom_call.1} parent=11 // pred_fallthru
          _
        // Predicated region
        $region25: #{tpu_custom_call.1} parent=11 // pred_check
          %p210 = pneg %p147
        $region26: #{tpu_custom_call.1} parent=11 // pred_check_branch
          %212 = sbr.rel (%p210) target = $region28
        $region27: #{tpu_custom_call.1} parent=11 // pred_region
          _
        $region28: #{tpu_custom_call.1} parent=11 // pred_fallthru
          _
      $region12: #{tpu_custom_call.1} parent=5 // pred_fallthru
        _
      %p213 = scmp.lt.s32.totalorder %s18, 2
      // Predicated region
      $region29: #{tpu_custom_call.1} parent=5 // pred_check
        %p214 = pneg %p213
      $region30: #{tpu_custom_call.1} parent=5 // pred_check_branch
        %216 = sbr.rel (%p214) target = $region32
      $region31: #{tpu_custom_call.1} parent=5 // pred_region
        // Predicated region
        $region33: #{tpu_custom_call.1} parent=31 // pred_check
          %p217 = pneg %p52
        $region34: #{tpu_custom_call.1} parent=31 // pred_check_branch
          %219 = sbr.rel (%p217) target = $region36
        $region35: #{tpu_custom_call.1} parent=31 // pred_region
          %s220 = sand.u32 %s42, 1
          %s221 = scalar_lea.sflag [#allocation4], %s220
          %s222 = sand.u32 %s42, 1
          %s223 = smul.addr %s222, 8
          %s224 = scalar_lea.vmem [#allocation3], %s223
          %s226 = ssub.s32 128, 128
          %227 = vsyncadd %s221, %s226
          %s228 = sadd.s32 %s26, %s25
          %s229 = smul.addr %s228, 128
          %s230 = scalar_lea.hbm %s0, %s229
          %s232 = sshll.u32 %s224, 4
          %s233 = int_to_ptr.vmem [resolvable:$true] %s232
          %235 = dma.hbm_to_vmem [thread:$0]  %s230, 128, %s233, %s221
        $region36: #{tpu_custom_call.1} parent=31 // pred_fallthru
          _
      $region32: #{tpu_custom_call.1} parent=5 // pred_fallthru
        _
      %p236 = scmp.le.s32.totalorder 1, %s18
      %p237 = scmp.lt.s32.totalorder %s18, 3
      %p238 = pnand %p236, %p237
      %p239 = pneg %p238
      // Predicated region
      $region37: #{tpu_custom_call.1} parent=5 // pred_check
        _
      $region38: #{tpu_custom_call.1} parent=5 // pred_check_branch
        %241 = sbr.rel (%p238) target = $region40
      $region39: #{tpu_custom_call.1} parent=5 // pred_region
        %s242 = ssub.s32 %s18, 1
        %s243 = sand.u32 %s45, 1
        %s244 = scalar_lea.sflag [#allocation4], %s243
        %s245 = sand.u32 %s45, 1
        %s246 = smul.addr %s245, 8
        %s247 = scalar_lea.vmem [#allocation3], %s246
        // Predicated region
        $region41: #{tpu_custom_call.1} parent=39 // pred_check
          %p248 = pneg %p58
        $region42: #{tpu_custom_call.1} parent=39 // pred_check_branch
          %250 = sbr.rel (%p248) target = $region44
        $region43: #{tpu_custom_call.1} parent=39 // pred_region
          %251 = dma.done %s244, 128
        $region44: #{tpu_custom_call.1} parent=39 // pred_fallthru
          _
        // Predicated region
        $region45: #{tpu_custom_call.1} parent=39 // pred_check
          %p252 = pneg %p84
        $region46: #{tpu_custom_call.1} parent=39 // pred_check_branch
          %254 = sbr.rel (%p252) target = $region48
        $region47: #{tpu_custom_call.1} parent=39 // pred_region
          %255 = dma.done [#allocation7], 512
        $region48: #{tpu_custom_call.1} parent=39 // pred_fallthru
          _
        %s256 = sand.u32 %s45, 1
        %s257 = scalar_lea.sflag [#allocation4], %s256
        %s258 = sand.u32 %s45, 1
        %s259 = smul.addr %s258, 8
        %s260 = scalar_lea.vmem [#allocation3], %s259
        %p261 = pneg %p58
        %p262 = pneg %p55
        %p263 = pneg %p84
        %p264 = pneg %p81
        %p265 = pneg %p105
        %p266 = pneg %p102
        %p267 = pneg %p126
        %p268 = pneg %p123
        %p269 = pneg %p147
        %p270 = pneg %p144
        %p271 = pneg %p173
        %p272 = pneg %p170
        %s273 = sand.u32 %s160, 1
        %s274 = scalar_lea.sflag [#allocation5], %s273
        %s275 = sand.u32 %s160, 1
        %s276 = smul.addr %s275, 8
        %s277 = scalar_lea.vmem [#allocation8], %s276
        %s278 = smul.u32 4, %s28
        %p279 = scmp.eq.s32.totalorder %s28, 0
        // Predicated region
        $region49: #{tpu_custom_call.1} parent=39 // pred_check
          %p280 = pneg %p279
        $region50: #{tpu_custom_call.1} parent=39 // pred_check_branch
          %282 = sbr.rel (%p280) target = $region52
        $region51: #{tpu_custom_call.1} parent=39 // pred_region
          %vm283 = vcmask 261120
          %284 = vst.msk [vmem:[#allocation2] sm:$0xff] %vm283, 0.0
        $region52: #{tpu_custom_call.1} parent=39 // pred_fallthru
          _
        %v285 = vld [vmem:[#allocation2] sm:$0xff]
        %v286 = vld [vmem:[%s247] sm:$0xff]
        %v287 = vld [vmem:[#allocation6] sm:$0xff]
        %v288 = vld [vmem:[#allocation6 + $0x8] sm:$0xff]
        %v289 = vld [vmem:[#allocation6 + $0x10] sm:$0xff]
        %v290 = vld [vmem:[#allocation6 + $0x18] sm:$0xff]
        %vm291 = vcmask 261120
        %v293 = vsel %vm291, %v286, 0
        %295 = vmatprep.subr.mxu0 0.0
        %296 = vmatpush1.msra.mxu0 %v287
        %297 = vmatprep.subr.mxu0 0.0
        %298 = vmatpush1.msra.mxu0 %v288
        %299 = vmatprep.subr.mxu0 0.0
        %300 = vmatpush1.msra.mxu0 %v289
        %301 = vmatprep.subr.mxu0 0.0
        %302 = vmatpush1.msra.mxu0 %v290
        %303 = vmatprep.subr.mxu0 0.0
        %304 = vmatpush1.msra.mxu0 0.0
        %305 = vmatprep.subr.mxu0 0.0
        %306 = vmatpush1.msra.mxu0 0.0
        %307 = vmatprep.subr.mxu0 0.0
        %308 = vmatpush1.msra.mxu0 0.0
        %309 = vmatprep.subr.mxu0 0.0
        %310 = vmatpush1.msra.mxu0 0.0
        %311 = vmatprep.subr.mxu0 0.0
        %312 = vmatpush1.msra.mxu0 0.0
        %313 = vmatprep.subr.mxu0 0.0
        %314 = vmatpush1.msra.mxu0 0.0
        %315 = vmatprep.subr.mxu0 0.0
        %316 = vmatpush1.msra.mxu0 0.0
        %317 = vmatprep.subr.mxu0 0.0
        %318 = vmatpush1.msra.mxu0 0.0
        %319 = vmatprep.subr.mxu0 0.0
        %320 = vmatpush1.msra.mxu0 0.0
        %321 = vmatprep.subr.mxu0 0.0
        %322 = vmatpush1.msra.mxu0 0.0
        %323 = vmatprep.subr.mxu0 0.0
        %324 = vmatpush1.msra.mxu0 0.0
        %325 = vmatprep.subr.mxu0 0.0
        %326 = vmatpush1.msra.mxu0 0.0
        %327 = vmatprep.subr.mxu0 0.0
        %328 = vmatpush1.msra.mxu0 0.0
        %329 = vmatprep.subr.mxu0 0.0
        %330 = vmatpush1.msra.mxu0 0.0
        %331 = vmatprep.subr.mxu0 0.0
        %332 = vmatpush1.msra.mxu0 0.0
        %333 = vmatprep.subr.mxu0 0.0
        %334 = vmatpush1.msra.mxu0 0.0
        %335 = vmatprep.subr.mxu0 0.0
        %336 = vmatpush1.msra.mxu0 0.0
        %337 = vmatprep.subr.mxu0 0.0
        %338 = vmatpush1.msra.mxu0 0.0
        %339 = vmatprep.subr.mxu0 0.0
        %340 = vmatpush1.msra.mxu0 0.0
        %341 = vmatprep.subr.mxu0 0.0
        %342 = vmatpush1.msra.mxu0 0.0
        %343 = vmatprep.subr.mxu0 0.0
        %344 = vmatpush1.msra.mxu0 0.0
        %345 = vmatprep.subr.mxu0 0.0
        %346 = vmatpush1.msra.mxu0 0.0
        %347 = vmatprep.subr.mxu0 0.0
        %348 = vmatpush1.msra.mxu0 0.0
        %349 = vmatprep.subr.mxu0 0.0
        %350 = vmatpush1.msra.mxu0 0.0
        %351 = vmatprep.subr.mxu0 0.0
        %352 = vmatpush1.msra.mxu0 0.0
        %353 = vmatprep.subr.mxu0 0.0
        %354 = vmatpush1.msra.mxu0 0.0
        %355 = vmatprep.subr.mxu0 0.0
        %356 = vmatpush1.msra.mxu0 0.0
        %357 = vmatprep.subr.mxu0 0.0
        %358 = vmatpush1.msra.mxu0 0.0
        %359 = vmatprep.mubr.f32.mxu0 0.0
        %360 = vmatmul.mubr.f32.gmra.mrb[0].mxu0 %v293
        %v361 = vpop.f32.mrb[0].mxu0
        %v362 = vadd.f32 0.0, %v361
        %v363 = vpop.f32.mrb[0].mxu0
        %364 = vdwg.mxu0
        %v365 = vadd.f32 %v285, %v362
        %366 = vst.msk [vmem:[#allocation2] sm:$0xff] %vm291, %v365
        // Predicated region
        $region53: #{tpu_custom_call.1} parent=39 // pred_check
          %p367 = pneg %p279
        $region54: #{tpu_custom_call.1} parent=39 // pred_check_branch
          %369 = sbr.rel (%p367) target = $region56
        $region55: #{tpu_custom_call.1} parent=39 // pred_region
          %v370 = vld [vmem:[#allocation2] sm:$0xff]
          %v371 = vld [vmem:[%s2] sm:$0x1]
          %v373 = vlaneseq
          %v374 = vshrl.u32 %v373, 7
          %v375 = vsub.s32 0, %v374
          %v376 = vrot.slane %v371, %v375
          %v378 = vadd.f32 %v370, %v376
          %v379 = vsel %vm291, %v378, 0.0
          %380 = vadd.xlane.f32.xlu0 %v379
          %v381 = vpop.xlane.xlu0 %380
          %v382 = vmul.f32 %v381, 0.03125
          %v383 = vmul.f32 %v378, %v378
          %v384 = vsel %vm291, %v383, 0.0
          %385 = vadd.xlane.f32.xlu0 %v384
          %v386 = vpop.xlane.xlu0 %385
          %v387 = vmul.f32 %v386, 0.03125
          %v388 = vmul.f32 %v382, %v382
          %v389 = vsub.f32 %v387, %v388
          %v390 = vmax.f32 %v389, 0.0
          %v391 = vsub.f32 %v378, %v382
          %v392 = vadd.f32 %v390, 1e-05
          %v393 = vrsqrt.pop %v392
          %v394 = vmul.f32 %v391, %v393
          %v395 = vld [vmem:[%s3] sm:$0x1]
          %v397 = vlaneseq
          %v398 = vshrl.u32 %v397, 7
          %v399 = vsub.s32 0, %v398
          %v400 = vrot.slane %v395, %v399
          %v402 = vmul.f32 %v394, %v400
          %v403 = vld [vmem:[%s4] sm:$0x1]
          %v405 = vlaneseq
          %v406 = vshrl.u32 %v405, 7
          %v407 = vsub.s32 0, %v406
          %v408 = vrot.slane %v403, %v407
          %v410 = vadd.f32 %v402, %v408
          %411 = vst.msk [vmem:[%s277] sm:$0xff] %vm291, %v410
        $region56: #{tpu_custom_call.1} parent=39 // pred_fallthru
          _
        %s412 = sand.u32 %s160, 1
        %s413 = scalar_lea.sflag [#allocation5], %s412
        %s414 = sand.u32 %s160, 1
        %s415 = smul.addr %s414, 8
        %s416 = scalar_lea.vmem [#allocation8], %s415
        // Predicated region
        $region57: #{tpu_custom_call.1} parent=39 // pred_check
          %p417 = pneg %p170
        $region58: #{tpu_custom_call.1} parent=39 // pred_check_branch
          %419 = sbr.rel (%p417) target = $region60
        $region59: #{tpu_custom_call.1} parent=39 // pred_region
          %s421 = ssub.s32 128, 128
          %422 = vsyncadd %s413, %s421
          %s423 = smul.addr %s27, 128
          %s424 = scalar_lea.hbm %s5, %s423
          %s426 = sshll.u32 %s416, 4
          %s427 = int_to_ptr.vmem [resolvable:$true] %s426
          %429 = dma.vmem_to_hbm [thread:$0]  %s427, 128, %s424, %s413
        $region60: #{tpu_custom_call.1} parent=39 // pred_fallthru
          _
      $region40: #{tpu_custom_call.1} parent=5 // pred_fallthru
        _
      %p430 = scmp.le.s32.totalorder 2, %s18
      // Predicated region
      $region61: #{tpu_custom_call.1} parent=5 // pred_check
        %p431 = pneg %p430
      $region62: #{tpu_custom_call.1} parent=5 // pred_check_branch
        %433 = sbr.rel (%p431) target = $region64
      $region63: #{tpu_custom_call.1} parent=5 // pred_region
        %s434 = ssub.s32 %s18, 2
        // Predicated region
        $region65: #{tpu_custom_call.1} parent=63 // pred_check
          %p435 = pneg %p176
        $region66: #{tpu_custom_call.1} parent=63 // pred_check_branch
          %437 = sbr.rel (%p435) target = $region68
        $region67: #{tpu_custom_call.1} parent=63 // pred_region
          %s438 = sand.u32 %s161, 1
          %s439 = scalar_lea.sflag [#allocation5], %s438
          %s440 = sand.u32 %s161, 1
          %s441 = smul.addr %s440, 8
          %s442 = scalar_lea.vmem [#allocation8], %s441
          %443 = dma.done %s439, 128
        $region68: #{tpu_custom_call.1} parent=63 // pred_fallthru
          _
      $region64: #{tpu_custom_call.1} parent=5 // pred_fallthru
        _
    $region6: #{tpu_custom_call.1} parent=1 // loop_footer
      %s22 = sadd.s32 1, %s18
    $region7: #{tpu_custom_call.1} parent=1 // loop_footer_branch
      %17 = sbr.rel target = $region3
    $region8: #{tpu_custom_call.1} parent=1 // loop_exit
      _
    %444 = vsyncpa [#allocation4], 1
    %s445 = scalar_lea.sflag [#allocation4], 1
    %446 = vsyncpa %s445, 1
    %447 = vsyncpa [#allocation7], 1
    %448 = vsyncpa [#allocation5], 1
    %s449 = scalar_lea.sflag [#allocation5], 1
    %450 = vsyncpa %s449, 1

</llo_original>
